<compile_context>
chip_gen: v7x
topology: tpu7x:2x2x1
jax: 0.10.0
libtpu: 0.0.40
codegen_flags: <defaults>
</compile_context>

<pallas_src>
import functools

import jax
import jax.numpy as jnp
from jax import lax
from jax.experimental import pallas as pl
from jax.experimental.pallas import tpu as pltpu

_VMEM_LIMIT_BYTES = 48 * 1024 * 1024   # explicit scoped-VMEM limit for Mosaic


def _make_dice_kernel(hw_valid: int, hw_tile: int, need_mask: bool):
    """Kernel closure over static spatial sizes / padding flag."""

    def kernel(pred_ref, tgt_ref, out_ref, inter_acc, sums_acc):
        # pred_ref : (NB, C, T)   native dtype (f32 / bf16)
        # tgt_ref  : (NB, 1, T)   int8 (or int32) labels
        # out_ref  : (NB, 2, C)   f32  -> [inter ; sums], resident across k
        # inter_acc, sums_acc : (NB, C) f32 VMEM accumulators
        k = pl.program_id(1)
        nk = pl.num_programs(1)

        @pl.when(k == 0)
        def _():
            inter_acc[...] = jnp.zeros_like(inter_acc)
            sums_acc[...] = jnp.zeros_like(sums_acc)

        def accumulate(masked):
            x = pred_ref[...].astype(jnp.float32)            # (NB, C, T)

            # softmax over the channel axis (== F.softmax(pred, dim=1))
            m = jnp.max(x, axis=1, keepdims=True)            # (NB, 1, T)
            e = jnp.exp(x - m)                               # (NB, C, T)
            denom = jnp.sum(e, axis=1, keepdims=True)        # (NB, 1, T)
            # approx reciprocal (EUP slot) + one Newton step keeps f32 parity
            r = pl.reciprocal(denom, approx=True)
            r = r * (2.0 - denom * r)
            p = e * r                                        # softmax probs

            t = tgt_ref[...].astype(jnp.int32)               # (NB, 1, T)
            cls = lax.broadcasted_iota(jnp.int32, x.shape, 1)
            hit = (cls == t).astype(jnp.float32)             # one-hot (NB, C, T)

            if masked:  # only the final tile contains spatial padding
                gidx = k * hw_tile + lax.broadcasted_iota(jnp.int32, t.shape, 2)
                valid = (gidx < hw_valid).astype(jnp.float32)  # (NB, 1, T)
                p = p * valid
                hit = hit * valid

            # inter = sum_spatial(p * onehot); sums = sum_spatial(p) + count
            inter_acc[...] += jnp.sum(p * hit, axis=-1)
            sums_acc[...] += jnp.sum(p, axis=-1) + jnp.sum(hit, axis=-1)

        if need_mask:
            @pl.when(k < nk - 1)          # steady-state tiles: no mask ops
            def _():
                accumulate(False)

            @pl.when(k == nk - 1)         # last tile: mask the padded lanes
            def _():
                accumulate(True)
        else:
            accumulate(False)

        @pl.when(k == nk - 1)
        def _():
            out_ref[:, 0:1, :] = inter_acc[...][:, None, :]
            out_ref[:, 1:2, :] = sums_acc[...][:, None, :]

    return kernel


def _pick_tiles(N, C, HW, pred_dtype, tgt_dtype,
                vmem_budget_bytes=32 * 1024 * 1024):
    """Pick (batch-per-block, spatial tile, padded spatial size).

    Budgets the *padded* VMEM footprint per grid step:
      * double-buffered pred block   : 2 * nb * pad(C, sublane) * bytes
      * double-buffered target block : 2 * nb * 32 rows (int8 (1,T) slab pads
                                       to 32 sublanes per image)
      * ~3 live tile-sized f32 intermediates around the softmax/reductions.
    Sized so v7x (64 MiB physical) keeps headroom and v5e/v6e never spill.
    """

    def _pad(n, m):
        return ((n + m - 1) // m) * m

    # Largest nb that still leaves >= 2 blocks on the parallel batch axis
    # (keeps both v7x TensorCores busy; harmless on single-TC v5e/v6e).
    nb = 1
    for cand in (8, 4, 2):
        if N % cand == 0 and N // cand >= 2:
            nb = cand
            break

    pred_bytes = jnp.dtype(pred_dtype).itemsize
    tgt_bytes = jnp.dtype(tgt_dtype).itemsize
    pred_sub = 32 // pred_bytes                  # 8 rows f32, 16 rows bf16
    tgt_sub = 32 // tgt_bytes                    # 32 rows int8
    c_pad_in = _pad(C, pred_sub)                 # padded channel rows (input)
    c_pad_f32 = _pad(C, 8)                       # padded rows of f32 temps

    per_lane = (2 * nb * c_pad_in * pred_bytes           # pred, double-buffered
                + 2 * nb * tgt_sub * tgt_bytes           # target, double-buffered
                + 3 * nb * c_pad_f32 * 4)                # f32 intermediates
    cap = max(128, (vmem_budget_bytes // per_lane) // 128 * 128)
    hw_tile = min(cap, _pad(HW, 128))
    hw_pad = _pad(HW, hw_tile)
    return nb, hw_tile, hw_pad


@functools.partial(jax.jit, static_argnames=("num_classes", "weights"))
def dice_loss_tpu(pred_nchw, target_nhw, num_classes, weights=None):
    """Pallas equivalent of DiceLoss.forward (multi-class path)."""
    # TODO(synk): num_classes == 1 (sigmoid / float-target) branch not implemented.
    assert num_classes > 1
    N, C, H, W = pred_nchw.shape
    assert C == num_classes
    HW = H * W

    # Keep pred in its native dtype (bf16 in training setups); cast in-kernel.
    pred = pred_nchw.reshape(N, C, HW)
    # int8 labels only when every valid class id fits (labels assumed < C).
    tgt_dtype = jnp.int8 if num_classes <= 127 else jnp.int32
    tgt = target_nhw.reshape(N, 1, HW).astype(tgt_dtype)

    nb, hw_tile, hw_pad = _pick_tiles(N, C, HW, pred.dtype, tgt_dtype)
    need_mask = hw_pad != HW

    if need_mask:
        pad = hw_pad - HW
        pred = jnp.pad(pred, ((0, 0), (0, 0), (0, pad)))
        tgt = jnp.pad(tgt, ((0, 0), (0, 0), (0, pad)))

    out = pl.pallas_call(
        _make_dice_kernel(HW, hw_tile, need_mask),
        out_shape=jax.ShapeDtypeStruct((N, 2, C), jnp.float32),
        grid=(N // nb, hw_pad // hw_tile),
        in_specs=[
            pl.BlockSpec((nb, C, hw_tile), lambda b, k: (b, 0, k)),
            pl.BlockSpec((nb, 1, hw_tile), lambda b, k: (b, 0, k)),
        ],
        out_specs=pl.BlockSpec((nb, 2, C), lambda b, k: (b, 0, 0)),
        scratch_shapes=[
            pltpu.VMEM((nb, C), jnp.float32),
            pltpu.VMEM((nb, C), jnp.float32),
        ],
        compiler_params=pltpu.CompilerParams(
            dimension_semantics=("parallel", "arbitrary"),
            vmem_limit_bytes=_VMEM_LIMIT_BYTES),
    )(pred, tgt)

    inter = out[:, 0, :]                                  # (N, C)
    sums = out[:, 1, :]                                   # (N, C)
    dice = (2.0 * inter / (sums + 1e-6)).mean(axis=0)     # (C,)
    if weights is not None:
        w = jnp.asarray(weights, dtype=jnp.float32)
        return ((1.0 - dice) * w).mean()
    return 1.0 - dice.mean()


def _dice_loss_ref(pred_nchw, target_nhw, num_classes, weights=None):
    """Pure-JAX reference mirroring the PyTorch code (for verification)."""
    p = jax.nn.softmax(pred_nchw.astype(jnp.float32), axis=1)
    onehot = jax.nn.one_hot(target_nhw.astype(jnp.int32), num_classes,
                            dtype=jnp.float32)            # (N,H,W,C)
    onehot = jnp.transpose(onehot, (0, 3, 1, 2))          # (N,C,H,W)
    inter = jnp.sum(p * onehot, axis=(2, 3))
    sums = jnp.sum(p + onehot, axis=(2, 3))
    dice = (2.0 * inter / (sums + 1e-6)).mean(axis=0)
    if weights is not None:
        w = jnp.asarray(weights, dtype=jnp.float32)
        return ((1.0 - dice) * w).mean()
    return 1.0 - dice.mean()


if __name__ == "__main__":
    num_classes = 4
    N, H, W = 2, 16, 16   # pred: (N, C, H, W) NCHW, target: (N, H, W)

    key = jax.random.PRNGKey(0)
    k_pred, k_tgt = jax.random.split(key)
    pred = jax.random.normal(k_pred, (N, num_classes, H, W), dtype=jnp.float32)
    target = jax.random.randint(k_tgt, (N, H, W), 0, num_classes, dtype=jnp.int32)

    # unweighted
    loss = jax.block_until_ready(dice_loss_tpu(pred, target, num_classes))
    ref = _dice_loss_ref(pred, target, num_classes)
    assert jnp.allclose(loss, ref, atol=1e-5, rtol=1e-5), (loss, ref)

    # weighted branch
    w = (0.1, 0.2, 0.3, 0.4)
    loss_w = jax.block_until_ready(
        dice_loss_tpu(pred, target, num_classes, weights=w))
    ref_w = _dice_loss_ref(pred, target, num_classes, weights=w)
    assert jnp.allclose(loss_w, ref_w, atol=1e-5, rtol=1e-5), (loss_w, ref_w)

    # bf16 pred path (native-dtype input, f32 cast happens inside the kernel)
    loss_bf16 = jax.block_until_ready(
        dice_loss_tpu(pred.astype(jnp.bfloat16), target, num_classes))
    assert jnp.allclose(loss_bf16, ref, atol=2e-2), (loss_bf16, ref)

    # non-128-aligned spatial size exercises the padded/masked last-tile path
    pred2 = jax.random.normal(k_pred, (3, num_classes, 10, 12), dtype=jnp.float32)
    target2 = jax.random.randint(k_tgt, (3, 10, 12), 0, num_classes, dtype=jnp.int32)
    loss2 = jax.block_until_ready(dice_loss_tpu(pred2, target2, num_classes))
    ref2 = _dice_loss_ref(pred2, target2, num_classes)
    assert jnp.allclose(loss2, ref2, atol=1e-5, rtol=1e-5), (loss2, ref2)

    # N=4 exercises nb=2 (>=2 parallel batch blocks for v7x megacore)
    pred3 = jax.random.normal(k_pred, (4, num_classes, 16, 16), dtype=jnp.float32)
    target3 = jax.random.randint(k_tgt, (4, 16, 16), 0, num_classes, dtype=jnp.int32)
    loss3 = jax.block_until_ready(dice_loss_tpu(pred3, target3, num_classes))
    ref3 = _dice_loss_ref(pred3, target3, num_classes)
    assert jnp.allclose(loss3, ref3, atol=1e-5, rtol=1e-5), (loss3, ref3)

    print("KERNEL_OK")
</pallas_src>

<mosaic_0001>
module attributes {stable_mosaic.version = 11 : i64} {
  func.func @kernel(%arg0: i32, %arg1: i32, %arg2: memref<1x4x256xf32, #tpu.memory_space<vmem>>, %arg3: memref<1x1x256xi8, #tpu.memory_space<vmem>>, %arg4: memref<1x2x4xf32, #tpu.memory_space<vmem>>, %arg5: memref<1x4xf32, #tpu.memory_space<vmem>>, %arg6: memref<1x4xf32, #tpu.memory_space<vmem>>) attributes {dimension_semantics = [#tpu.dimension_semantics<parallel>, #tpu.dimension_semantics<arbitrary>], iteration_bounds = array<i64: 2, 1>, scalar_prefetch = 0 : i64, scratch_operands = 2 : i64, tpu.core_type = #tpu.core_type<tc>, window_params = [{transform_indices = @transform_0, window_bounds = array<i64: 1, 4, 256>}, {transform_indices = @transform_1, window_bounds = array<i64: 1, 1, 256>}, {transform_indices = @transform_2, window_bounds = array<i64: 1, 2, 4>}]} {
    %c0_i32 = arith.constant 0 : i32
    %0 = arith.cmpi eq, %arg1, %c0_i32 : i32
    %1 = arith.extui %0 : i1 to i32
    %c0_i32_0 = arith.constant 0 : i32
    %2 = arith.cmpi ne, %1, %c0_i32_0 : i32
    scf.if %2 {
      %cst_21 = arith.constant 0.000000e+00 : f32
      %39 = vector.broadcast %cst_21 : f32 to vector<1x4xf32>
      %c0_22 = arith.constant 0 : index
      %c0_23 = arith.constant 0 : index
      %40 = vector.load %arg5[%c0_22, %c0_23] : memref<1x4xf32, #tpu.memory_space<vmem>>, vector<1x4xf32>
      tpu.vector_store %arg5[%c0_22, %c0_23], %39 {strides = array<i32>} : memref<1x4xf32, #tpu.memory_space<vmem>>, vector<1x4xf32>,
      %cst_24 = arith.constant 0.000000e+00 : f32
      %41 = vector.broadcast %cst_24 : f32 to vector<1x4xf32>
      %c0_25 = arith.constant 0 : index
      %c0_26 = arith.constant 0 : index
      %42 = vector.load %arg6[%c0_25, %c0_26] : memref<1x4xf32, #tpu.memory_space<vmem>>, vector<1x4xf32>
      tpu.vector_store %arg6[%c0_25, %c0_26], %41 {strides = array<i32>} : memref<1x4xf32, #tpu.memory_space<vmem>>, vector<1x4xf32>,
    } else {
    }
    %c0 = arith.constant 0 : index
    %c0_1 = arith.constant 0 : index
    %c0_2 = arith.constant 0 : index
    %3 = vector.load %arg2[%c0, %c0_1, %c0_2] : memref<1x4x256xf32, #tpu.memory_space<vmem>>, vector<1x4x256xf32>
    %cst = arith.constant dense<0xFF800000> : vector<1x256xf32>
    %4 = vector.multi_reduction <maximumf>, %3, %cst [1] : vector<1x4x256xf32> to vector<1x256xf32>
    %5 = vector.shape_cast %4 : vector<1x256xf32> to vector<1x1x256xf32>
    %6 = vector.broadcast %5 : vector<1x1x256xf32> to vector<1x4x256xf32>
    %7 = arith.subf %3, %6 : vector<1x4x256xf32>
    %8 = math.exp %7 : vector<1x4x256xf32>
    %cst_3 = arith.constant dense<0.000000e+00> : vector<1x256xf32>
    %9 = vector.multi_reduction <add>, %8, %cst_3 [1] : vector<1x4x256xf32> to vector<1x256xf32>
    %10 = vector.shape_cast %9 : vector<1x256xf32> to vector<1x1x256xf32>
    %11 = tpu.reciprocal %10 {approx = true} : vector<1x1x256xf32> -> vector<1x1x256xf32>
    %12 = arith.mulf %10, %11 : vector<1x1x256xf32>
    %cst_4 = arith.constant 2.000000e+00 : f32
    %13 = vector.broadcast %cst_4 : f32 to vector<1x1x256xf32>
    %14 = arith.subf %13, %12 : vector<1x1x256xf32>
    %15 = arith.mulf %11, %14 : vector<1x1x256xf32>
    %16 = vector.broadcast %15 : vector<1x1x256xf32> to vector<1x4x256xf32>
    %17 = arith.mulf %8, %16 : vector<1x4x256xf32>
    %c0_5 = arith.constant 0 : index
    %c0_6 = arith.constant 0 : index
    %c0_7 = arith.constant 0 : index
    %18 = vector.load %arg3[%c0_5, %c0_6, %c0_7] : memref<1x1x256xi8, #tpu.memory_space<vmem>>, vector<1x1x256xi8>
    %19 = arith.extsi %18 : vector<1x1x256xi8> to vector<1x1x256xi32>
    %20 = tpu.iota {dimensions = array<i32: 1>} : vector<1x4x256xi32>
    %21 = vector.broadcast %19 : vector<1x1x256xi32> to vector<1x4x256xi32>
    %22 = arith.cmpi eq, %20, %21 : vector<1x4x256xi32>
    %23 = arith.extui %22 : vector<1x4x256xi1> to vector<1x4x256xi32>
    %24 = arith.sitofp %23 : vector<1x4x256xi32> to vector<1x4x256xf32>
    %c0_8 = arith.constant 0 : index
    %c0_9 = arith.constant 0 : index
    %25 = vector.load %arg5[%c0_8, %c0_9] : memref<1x4xf32, #tpu.memory_space<vmem>>, vector<1x4xf32>
    %26 = arith.mulf %17, %24 : vector<1x4x256xf32>
    %cst_10 = arith.constant dense<0.000000e+00> : vector<1x4xf32>
    %27 = vector.multi_reduction <add>, %26, %cst_10 [2] : vector<1x4x256xf32> to vector<1x4xf32>
    %28 = arith.addf %25, %27 : vector<1x4xf32>
    %c0_11 = arith.constant 0 : index
    %c0_12 = arith.constant 0 : index
    %29 = vector.load %arg5[%c0_11, %c0_12] : memref<1x4xf32, #tpu.memory_space<vmem>>, vector<1x4xf32>
    tpu.vector_store %arg5[%c0_11, %c0_12], %28 {strides = array<i32>} : memref<1x4xf32, #tpu.memory_space<vmem>>, vector<1x4xf32>,
    %c0_13 = arith.constant 0 : index
    %c0_14 = arith.constant 0 : index
    %30 = vector.load %arg6[%c0_13, %c0_14] : memref<1x4xf32, #tpu.memory_space<vmem>>, vector<1x4xf32>
    %cst_15 = arith.constant dense<0.000000e+00> : vector<1x4xf32>
    %31 = vector.multi_reduction <add>, %17, %cst_15 [2] : vector<1x4x256xf32> to vector<1x4xf32>
    %cst_16 = arith.constant dense<0.000000e+00> : vector<1x4xf32>
    %32 = vector.multi_reduction <add>, %24, %cst_16 [2] : vector<1x4x256xf32> to vector<1x4xf32>
    %33 = arith.addf %31, %32 : vector<1x4xf32>
    %34 = arith.addf %30, %33 : vector<1x4xf32>
    %c0_17 = arith.constant 0 : index
    %c0_18 = arith.constant 0 : index
    %35 = vector.load %arg6[%c0_17, %c0_18] : memref<1x4xf32, #tpu.memory_space<vmem>>, vector<1x4xf32>
    tpu.vector_store %arg6[%c0_17, %c0_18], %34 {strides = array<i32>} : memref<1x4xf32, #tpu.memory_space<vmem>>, vector<1x4xf32>,
    %c0_i32_19 = arith.constant 0 : i32
    %36 = arith.cmpi eq, %arg1, %c0_i32_19 : i32
    %37 = arith.extui %36 : i1 to i32
    %c0_i32_20 = arith.constant 0 : i32
    %38 = arith.cmpi ne, %37, %c0_i32_20 : i32
    scf.if %38 {
      %c0_21 = arith.constant 0 : index
      %c0_22 = arith.constant 0 : index
      %39 = vector.load %arg5[%c0_21, %c0_22] : memref<1x4xf32, #tpu.memory_space<vmem>>, vector<1x4xf32>
      %40 = vector.shape_cast %39 : vector<1x4xf32> to vector<1x1x4xf32>
      %c0_23 = arith.constant 0 : index
      %c0_24 = arith.constant 0 : index
      %c0_25 = arith.constant 0 : index
      %41 = vector.load %arg4[%c0_23, %c0_24, %c0_25] : memref<1x2x4xf32, #tpu.memory_space<vmem>>, vector<1x1x4xf32>
      tpu.vector_store %arg4[%c0_23, %c0_24, %c0_25], %40 {strides = array<i32>} : memref<1x2x4xf32, #tpu.memory_space<vmem>>, vector<1x1x4xf32>,
      %c0_26 = arith.constant 0 : index
      %c0_27 = arith.constant 0 : index
      %42 = vector.load %arg6[%c0_26, %c0_27] : memref<1x4xf32, #tpu.memory_space<vmem>>, vector<1x4xf32>
      %43 = vector.shape_cast %42 : vector<1x4xf32> to vector<1x1x4xf32>
      %c0_28 = arith.constant 0 : index
      %c1 = arith.constant 1 : index
      %c0_29 = arith.constant 0 : index
      %44 = vector.load %arg4[%c0_28, %c1, %c0_29] : memref<1x2x4xf32, #tpu.memory_space<vmem>>, vector<1x1x4xf32>
      tpu.vector_store %arg4[%c0_28, %c1, %c0_29], %43 {strides = array<i32>} : memref<1x2x4xf32, #tpu.memory_space<vmem>>, vector<1x1x4xf32>,
    } else {
    }
    return
  }
  func.func @transform_0(%arg0: i32, %arg1: i32) -> (i32, i32, i32) {
    %c0_i32 = arith.constant 0 : i32
    %c0_i32_0 = arith.constant 0 : i32
    return %arg0, %c0_i32, %arg1 : i32, i32, i32
  }
  func.func @transform_1(%arg0: i32, %arg1: i32) -> (i32, i32, i32) {
    %c0_i32 = arith.constant 0 : i32
    %c0_i32_0 = arith.constant 0 : i32
    return %arg0, %c0_i32, %arg1 : i32, i32, i32
  }
  func.func @transform_2(%arg0: i32, %arg1: i32) -> (i32, i32, i32) {
    %c0_i32 = arith.constant 0 : i32
    %c0_i32_0 = arith.constant 0 : i32
    %c0_i32_1 = arith.constant 0 : i32
    return %arg0, %c0_i32, %c0_i32_0 : i32, i32, i32
  }
}

</mosaic_0001>

<llo_original>
// kernel: dice_loss_tpu.1
$region0: #{dice_loss_tpu.1}
  #allocation0 [shape = 'u32[]', space=smem, size = 0x4, offset = 0x4, fixed_abs, tag = 'smem constant byte address 0x4 - core index']
  #allocation1 [shape = 'u32[144,128]{1,0:T(1,128)}', space=vmem, size = 0x12000, scoped, tag = 'internal scratch']
  #allocation2 [shape = 'f32[1,4]{1,0:T(1,128)}', space=vmem, size = 0x200, scoped, tag = 'scratch operand']
  #allocation3 [shape = 'f32[1,4]{1,0:T(1,128)}', space=vmem, size = 0x200, scoped, tag = 'scratch operand']
  %s0 = inlined_call_operand.vmem [shape: f32[2,4,256], index: 0, kind: input, shape index: {}]
  %s1 = inlined_call_operand.vmem [shape: s8[2,1,256], index: 1, kind: input, shape index: {}]
  %s2 = inlined_call_operand.vmem [shape: f32[2,2,4], index: 2, kind: output, shape index: {}]
  %s3 = sld [smem:[#allocation0]]
  $region49: #{dice_loss_tpu.1} parent=0
    _
  %s5 = ssub.s32 1, %s3
  %s6 = scalar_select 0, %s5, %s3
  loop: start=0, step=1, limit=4
  $region2: #{dice_loss_tpu.1} parent=0 // loop_pre_header
    _
  $region3: #{dice_loss_tpu.1} parent=0 // loop_header
    %s8 = sphi 0, %s12
    %p9 = scmp.ge.s32.totalorder %s8, 4
    %s15 = sphi 0, %s27
    %s16 = sphi 0, %s23
    %s17 = sphi 0, %s15
    %s18 = sphi 0, %s16
    %s19 = sphi 0, %s17
    %s20 = sphi 0, %s18
    %s32 = sphi 0, %s34
    %s35 = sphi 0, %s32
    %s36 = sphi 0, %s35
    %s52 = sphi 0, %s36
    %s60 = sphi 0, %s62
    %s63 = sphi 0, %s60
    %s64 = sphi 0, %s63
    %s80 = sphi 0, %s64
    %s86 = sphi 0, %s88
    %s89 = sphi 0, %s86
    %s90 = sphi 0, %s89
    %s106 = sphi 0, %s90
  $region4: #{dice_loss_tpu.1} parent=0 // loop_header_branch
    %11 = sbr.rel (%p9) target = $region8
  $region5: #{dice_loss_tpu.1} parent=0 // loop_body
    %s13 = ssub.s32 %s8, 1
    %s14 = ssub.s32 %s8, 2
    %s21 = sadd.s32 1, %s16
    %p22 = scmp.ge.s32.totalorder %s21, 1
    %s23 = scalar_select %p22, 0, %s21
    %s24 = sadd.s32 1, %s15
    %s25 = scalar_select %p22, %s24, %s15
    %p26 = scmp.ge.s32.totalorder %s25, 2
    %s27 = scalar_select %p26, 0, %s25
    %s28 = ssub.s32 %s15, %s27
    %s29 = ssub.s32 %s16, %s23
    %s30 = sor.u32 %s28, %s29
    %p31 = scmp.eq.s32.totalorder %s30, 0
    %s33 = sadd.s32 %s32, 1
    %s34 = scalar_select %p31, %s32, %s33
    %p37 = pneg %p31
    %p38 = scmp.eq.s32.totalorder %s8, 1
    %p39 = por %p37, %p38
    %p40 = scmp.ne.s32.totalorder %s32, %s35
    %p41 = scmp.eq.s32.totalorder %s8, 0
    %p42 = por %p40, %p41
    %p43 = scmp.ne.s32.totalorder %s32, %s35
    %p44 = scmp.eq.s32.totalorder %s13, 1
    %p45 = por %p43, %p44
    %p46 = scmp.ne.s32.totalorder %s35, %s36
    %p47 = scmp.eq.s32.totalorder %s13, 0
    %p48 = por %p46, %p47
    %p49 = scmp.ne.s32.totalorder %s35, %s36
    %p50 = scmp.eq.s32.totalorder %s14, 1
    %p51 = por %p49, %p50
    %p53 = scmp.ne.s32.totalorder %s36, %s52
    %p54 = scmp.eq.s32.totalorder %s14, 0
    %p55 = por %p53, %p54
    %s56 = ssub.s32 %s15, %s27
    %s57 = ssub.s32 %s16, %s23
    %s58 = sor.u32 %s56, %s57
    %p59 = scmp.eq.s32.totalorder %s58, 0
    %s61 = sadd.s32 %s60, 1
    %s62 = scalar_select %p59, %s60, %s61
    %p65 = pneg %p59
    %p66 = scmp.eq.s32.totalorder %s8, 1
    %p67 = por %p65, %p66
    %p68 = scmp.ne.s32.totalorder %s60, %s63
    %p69 = scmp.eq.s32.totalorder %s8, 0
    %p70 = por %p68, %p69
    %p71 = scmp.ne.s32.totalorder %s60, %s63
    %p72 = scmp.eq.s32.totalorder %s13, 1
    %p73 = por %p71, %p72
    %p74 = scmp.ne.s32.totalorder %s63, %s64
    %p75 = scmp.eq.s32.totalorder %s13, 0
    %p76 = por %p74, %p75
    %p77 = scmp.ne.s32.totalorder %s63, %s64
    %p78 = scmp.eq.s32.totalorder %s14, 1
    %p79 = por %p77, %p78
    %p81 = scmp.ne.s32.totalorder %s64, %s80
    %p82 = scmp.eq.s32.totalorder %s14, 0
    %p83 = por %p81, %p82
    %s84 = ssub.s32 %s15, %s27
    %p85 = scmp.eq.s32.totalorder %s84, 0
    %s87 = sadd.s32 %s86, 1
    %s88 = scalar_select %p85, %s86, %s87
    %p91 = pneg %p85
    %p92 = scmp.eq.s32.totalorder %s8, 1
    %p93 = por %p91, %p92
    %p94 = scmp.ne.s32.totalorder %s86, %s89
    %p95 = scmp.eq.s32.totalorder %s8, 0
    %p96 = por %p94, %p95
    %p97 = scmp.ne.s32.totalorder %s86, %s89
    %p98 = scmp.eq.s32.totalorder %s13, 1
    %p99 = por %p97, %p98
    %p100 = scmp.ne.s32.totalorder %s89, %s90
    %p101 = scmp.eq.s32.totalorder %s13, 0
    %p102 = por %p100, %p101
    %p103 = scmp.ne.s32.totalorder %s89, %s90
    %p104 = scmp.eq.s32.totalorder %s14, 1
    %p105 = por %p103, %p104
    %p107 = scmp.ne.s32.totalorder %s90, %s106
    %p108 = scmp.eq.s32.totalorder %s14, 0
    %p109 = por %p107, %p108
    %p110 = scmp.le.s32.totalorder 1, %s8
    %p111 = scmp.lt.s32.totalorder %s8, 3
    %p112 = pnand %p110, %p111
    %p113 = pneg %p112
    // Predicated region
    $region9: #{dice_loss_tpu.1} parent=5 // pred_check
      _
    $region10: #{dice_loss_tpu.1} parent=5 // pred_check_branch
      %115 = sbr.rel (%p112) target = $region12
    $region11: #{dice_loss_tpu.1} parent=5 // pred_region
      %s116 = ssub.s32 %s8, 1
    $region12: #{dice_loss_tpu.1} parent=5 // pred_fallthru
      _
    %p117 = scmp.lt.s32.totalorder %s8, 2
    // Predicated region
    $region13: #{dice_loss_tpu.1} parent=5 // pred_check
      %p118 = pneg %p117
    $region14: #{dice_loss_tpu.1} parent=5 // pred_check_branch
      %120 = sbr.rel (%p118) target = $region16
    $region15: #{dice_loss_tpu.1} parent=5 // pred_region
      // Predicated region
      $region17: #{dice_loss_tpu.1} parent=15 // pred_check
        %p121 = pneg %p42
      $region18: #{dice_loss_tpu.1} parent=15 // pred_check_branch
        %123 = sbr.rel (%p121) target = $region20
      $region19: #{dice_loss_tpu.1} parent=15 // pred_region
        %s124 = smul.u32 2, %s16
        %p125 = scmp.lt.s32.totalorder %s15, 1
        %s126 = scalar_select %p125, %s15, 1
        %p127 = scmp.lt.s32.totalorder %s124, 1
        %s128 = scalar_select %p127, %s124, 1
        %s129 = smul.addr %s126, 2
        %s130 = sadd.s32 %s128, %s129
        %s131 = smul.addr %s130, 4
        %s132 = scalar_lea.vmem %s0, %s131
        %s133 = smul.u32 2, %s16
      $region20: #{dice_loss_tpu.1} parent=15 // pred_fallthru
        _
      // Predicated region
      $region21: #{dice_loss_tpu.1} parent=15 // pred_check
        %p134 = pneg %p70
      $region22: #{dice_loss_tpu.1} parent=15 // pred_check_branch
        %136 = sbr.rel (%p134) target = $region24
      $region23: #{dice_loss_tpu.1} parent=15 // pred_region
        %s137 = smul.u32 2, %s16
        %p138 = scmp.lt.s32.totalorder %s15, 1
        %s139 = scalar_select %p138, %s15, 1
        %p140 = scmp.lt.s32.totalorder %s137, 1
        %s141 = scalar_select %p140, %s137, 1
        %s142 = smul.addr %s139, 2
        %s143 = sadd.s32 %s141, %s142
        %s144 = scalar_lea.vmem %s1, %s143
        %s145 = smul.u32 2, %s16
      $region24: #{dice_loss_tpu.1} parent=15 // pred_fallthru
        _
    $region16: #{dice_loss_tpu.1} parent=5 // pred_fallthru
      _
    %p146 = scmp.le.s32.totalorder 1, %s8
    %p147 = scmp.lt.s32.totalorder %s8, 3
    %p148 = pnand %p146, %p147
    %p149 = pneg %p148
    // Predicated region
    $region25: #{dice_loss_tpu.1} parent=5 // pred_check
      _
    $region26: #{dice_loss_tpu.1} parent=5 // pred_check_branch
      %151 = sbr.rel (%p148) target = $region28
    $region27: #{dice_loss_tpu.1} parent=5 // pred_region
      %s152 = ssub.s32 %s8, 1
      %s153 = smul.u32 2, %s18
      %p154 = scmp.lt.s32.totalorder %s17, 1
      %s155 = scalar_select %p154, %s17, 1
      %p156 = scmp.lt.s32.totalorder %s153, 1
      %s157 = scalar_select %p156, %s153, 1
      %s158 = smul.addr %s155, 2
      %s159 = sadd.s32 %s157, %s158
      %s160 = smul.addr %s159, 4
      %s161 = scalar_lea.vmem %s0, %s160
      %p162 = pneg %p48
      %p163 = pneg %p45
      %s164 = smul.u32 2, %s18
      %p165 = scmp.lt.s32.totalorder %s17, 1
      %s166 = scalar_select %p165, %s17, 1
      %p167 = scmp.lt.s32.totalorder %s164, 1
      %s168 = scalar_select %p167, %s164, 1
      %s169 = smul.addr %s166, 2
      %s170 = sadd.s32 %s168, %s169
      %s171 = scalar_lea.vmem %s1, %s170
      %p172 = pneg %p76
      %p173 = pneg %p73
      %p174 = pneg %p102
      %p175 = pneg %p99
      %p176 = scmp.lt.s32.totalorder %s17, 1
      %s177 = scalar_select %p176, %s17, 1
      %s178 = smul.addr %s177, 2
      %s179 = scalar_lea.vmem %s2, %s178
      %s180 = smul.u32 2, %s18
      %p181 = scmp.lt.s32.totalorder %s17, 1
      %s182 = scalar_select %p181, %s17, 1
      %p183 = scmp.lt.s32.totalorder %s180, 1
      %s184 = scalar_select %p183, %s180, 1
      %s185 = smul.addr %s182, 2
      %s186 = sadd.s32 %s184, %s185
      %s187 = smul.addr %s186, 4
      %s188 = scalar_lea.vmem %s0, %s187
      %s189 = smul.u32 2, %s18
      %s190 = smul.u32 2, %s18
      %p191 = scmp.lt.s32.totalorder %s17, 1
      %s192 = scalar_select %p191, %s17, 1
      %p193 = scmp.lt.s32.totalorder %s190, 1
      %s194 = scalar_select %p193, %s190, 1
      %s195 = smul.addr %s192, 2
      %s196 = sadd.s32 %s194, %s195
      %s197 = scalar_lea.vmem %s1, %s196
      %s198 = smul.u32 2, %s18
      %p199 = scmp.lt.s32.totalorder %s17, 1
      %s200 = scalar_select %p199, %s17, 1
      %s201 = smul.addr %s200, 2
      %s202 = scalar_lea.vmem %s2, %s201
      %p203 = scmp.eq.s32.totalorder %s18, 0
      // Predicated region
      $region29: #{dice_loss_tpu.1} parent=27 // pred_check
        %p204 = pneg %p203
      $region30: #{dice_loss_tpu.1} parent=27 // pred_check_branch
        %206 = sbr.rel (%p204) target = $region32
      $region31: #{dice_loss_tpu.1} parent=27 // pred_region
        %vm207 = vcmask 24576
        %208 = vst.msk [vmem:[#allocation2] sm:$0x1] %vm207, 0.0
        %209 = vst.msk [vmem:[#allocation3] sm:$0x1] %vm207, 0.0
      $region32: #{dice_loss_tpu.1} parent=27 // pred_fallthru
        _
      %v210 = vld [vmem:[%s188] sm:$0xff]
      %v212 = vcombine.high %v210, %v210
      %vm214 = vcmask 1043456
      %v215 = vsel %vm214, %v210, -inf
      %v216 = vrot.slane %v215, 4
      %v217 = vmax.f32 %v215, %v216
      %v218 = vrot.slane %v217, 2
      %v219 = vmax.f32 %v217, %v218
      %v220 = vrot.slane %v219, 1
      %v221 = vmax.f32 %v219, %v220
      %v222 = vsel %vm214, %v212, -inf
      %v223 = vrot.slane %v222, 4
      %v224 = vmax.f32 %v222, %v223
      %v225 = vrot.slane %v224, 2
      %v226 = vmax.f32 %v224, %v225
      %v227 = vrot.slane %v226, 1
      %v228 = vmax.f32 %v226, %v227
      %v231 = vcombine.low %v221, %v228
      %v233 = vsub.f32 %v210, %v231
      %v234 = vmul.f32 %v233, 1.442695
      %v235 = vpow.pop %v234
      %v237 = vcombine.high %v235, %v235
      %v239 = vsel %vm214, %v235, 0.0
      %v240 = vrot.slane %v239, 4
      %v241 = vadd.f32 %v239, %v240
      %v242 = vrot.slane %v241, 2
      %v243 = vadd.f32 %v241, %v242
      %v244 = vrot.slane %v243, 1
      %v245 = vadd.f32 %v243, %v244
      %v246 = vsel %vm214, %v237, 0.0
      %v247 = vrot.slane %v246, 4
      %v248 = vadd.f32 %v246, %v247
      %v249 = vrot.slane %v248, 2
      %v250 = vadd.f32 %v248, %v249
      %v251 = vrot.slane %v250, 1
      %v252 = vadd.f32 %v250, %v251
      %v253 = vrcp.pop %v245
      %v254 = vrcp.pop %v252
      %v255 = vmul.f32 %v245, %v253
      %v256 = vmul.f32 %v252, %v254
      %v257 = vsub.f32 2.0, %v255
      %v258 = vsub.f32 2.0, %v256
      %v259 = vmul.f32 %v253, %v257
      %v260 = vmul.f32 %v254, %v258
      %v263 = vcombine.low %v259, %v260
      %v265 = vmul.f32 %v235, %v263
      %v266 = vld [vmem:[%s197] sm:$0x3]
      %v267 = vunpack.c.0.s8 %v266
      %v268 = vlaneseq
      %v269 = vshrl.u32 %v268, 7
      %v270 = vlaneseq
      %v271 = vshrl.u32 %v270, 7
      %v272 = vsub.s32 0, %v271
      %v273 = vrot.slane %v267, %v272
      %v274 = vlaneseq
      %v275 = vshrl.u32 %v274, 7
      %v276 = vsub.s32 4, %v275
      %v277 = vrot.slane %v267, %v276
      %v278 = vlaneseq
      %v279 = vshrl.u32 %v278, 7
      %v280 = vsub.s32 0, %v279
      %v281 = vrot.slane %v273, %v280
      %v282 = vlaneseq
      %v283 = vshrl.u32 %v282, 7
      %v284 = vsub.s32 0, %v283
      %v285 = vrot.slane %v277, %v284
      %vm286 = vcmp.eq.s32.totalorder %v269, %v281
      %vm287 = vcmp.eq.s32.totalorder %v269, %v285
      %v288 = vsel %vm286, 1, 0
      %v289 = vsel %vm287, 1, 0
      %v290 = vcvt.s32.f32 %v288
      %v291 = vcvt.s32.f32 %v289
      %v292 = vld [vmem:[#allocation2] sm:$0x1]
      %v295 = vcombine.low %v290, %v291
      %v297 = vmul.f32 %v265, %v295
      %v299 = vcombine.high %v297, %v297
      %v301 = vsel %vm214, %v297, 0.0
      %v302 = vsel %vm214, %v299, 0.0
      %v303 = vadd.f32 %v301, %v302
      %304 = vadd.xlane.f32.xlu0 %v303
      %v305 = vpop.xlane.xlu0 %304
      %v307 = vlaneseq
      %v308 = vshrl.u32 %v307, 7
      %v309 = vsub.s32 0, %v308
      %v310 = vrot.slane %v305, %v309
      %v311 = vlaneseq
      %v312 = vshrl.u32 %v311, 7
      %v313 = vsub.s32 1, %v312
      %v314 = vrot.slane %v305, %v313
      %v315 = vlaneseq
      %v316 = vshrl.u32 %v315, 7
      %v317 = vsub.s32 2, %v316
      %v318 = vrot.slane %v305, %v317
      %v319 = vlaneseq
      %v320 = vshrl.u32 %v319, 7
      %v321 = vsub.s32 3, %v320
      %v322 = vrot.slane %v305, %v321
      %v323 = vcombine.low %v310, %v314
      %v324 = vcombine.low %v318, %v322
      %v326 = vunpack.c.l.s4 1966171168
      %v327 = vunpack.c.0.s8 %v326
      %v328 = vlaneseq
      %v329 = vshrl.u32 %v328, 7
      %v330 = vsub.s32 %v327, %v329
      %v331 = vrot.slane %v323, %v330
      %v333 = vunpack.c.l.s4 1966171168
      %v334 = vunpack.c.0.s8 %v333
      %v335 = vlaneseq
      %v336 = vshrl.u32 %v335, 7
      %v337 = vsub.s32 %v334, %v336
      %v338 = vrot.slane %v324, %v337
      %v339 = vcombine.low %v331, %v338
      %v341 = vunpack.c.l.s4 1966171168
      %v342 = vunpack.c.0.s8 %v341
      %v343 = vlaneseq
      %v344 = vshrl.u32 %v343, 7
      %v345 = vsub.s32 %v342, %v344
      %v346 = vrot.slane %v339, %v345
      %347 = vset.pattern.permute.xlu0 0
      %348 = vperm.xlu0 %347, %v346
      %v349 = vpop.permute.xlu0 %348
      %v350 = vlaneseq
      %v351 = vand.u32 %v350, 127
      %v352 = vlaneseq
      %v353 = vshrl.u32 %v352, 7
      %v354 = vsub.s32 %v351, %v353
      %v355 = vrot.slane %v349, %v354
      %v357 = vunpack.c.l.s4 1966171168
      %v358 = vunpack.c.0.s8 %v357
      %v359 = vlaneseq
      %v360 = vshrl.u32 %v359, 7
      %v361 = vsub.s32 %v358, %v360
      %v362 = vrot.slane %v355, %v361
      %v364 = vunpack.c.l.s4 1966171168
      %v365 = vunpack.c.0.s8 %v364
      %v366 = vlaneseq
      %v367 = vshrl.u32 %v366, 7
      %v368 = vsub.s32 %v365, %v367
      %v369 = vrot.slane %v362, %v368
      %v371 = vadd.f32 %v292, %v369
      %vm372 = vcmask 24576
      %373 = vst.msk [vmem:[#allocation2] sm:$0x1] %vm372, %v371
      %v374 = vld [vmem:[#allocation3] sm:$0x1]
      %v376 = vcombine.high %v265, %v265
      %v378 = vsel %vm214, %v265, 0.0
      %v379 = vsel %vm214, %v376, 0.0
      %v380 = vadd.f32 %v378, %v379
      %381 = vadd.xlane.f32.xlu0 %v380
      %v382 = vpop.xlane.xlu0 %381
      %v383 = vsel %vm214, %v290, 0.0
      %v384 = vsel %vm214, %v291, 0.0
      %v385 = vadd.f32 %v383, %v384
      %386 = vadd.xlane.f32.xlu0 %v385
      %v387 = vpop.xlane.xlu0 %386
      %v388 = vadd.f32 %v382, %v387
      %v390 = vlaneseq
      %v391 = vshrl.u32 %v390, 7
      %v392 = vsub.s32 0, %v391
      %v393 = vrot.slane %v388, %v392
      %v394 = vlaneseq
      %v395 = vshrl.u32 %v394, 7
      %v396 = vsub.s32 1, %v395
      %v397 = vrot.slane %v388, %v396
      %v398 = vlaneseq
      %v399 = vshrl.u32 %v398, 7
      %v400 = vsub.s32 2, %v399
      %v401 = vrot.slane %v388, %v400
      %v402 = vlaneseq
      %v403 = vshrl.u32 %v402, 7
      %v404 = vsub.s32 3, %v403
      %v405 = vrot.slane %v388, %v404
      %v406 = vcombine.low %v393, %v397
      %v407 = vcombine.low %v401, %v405
      %v409 = vunpack.c.l.s4 1966171168
      %v410 = vunpack.c.0.s8 %v409
      %v411 = vlaneseq
      %v412 = vshrl.u32 %v411, 7
      %v413 = vsub.s32 %v410, %v412
      %v414 = vrot.slane %v406, %v413
      %v416 = vunpack.c.l.s4 1966171168
      %v417 = vunpack.c.0.s8 %v416
      %v418 = vlaneseq
      %v419 = vshrl.u32 %v418, 7
      %v420 = vsub.s32 %v417, %v419
      %v421 = vrot.slane %v407, %v420
      %v422 = vcombine.low %v414, %v421
      %v424 = vunpack.c.l.s4 1966171168
      %v425 = vunpack.c.0.s8 %v424
      %v426 = vlaneseq
      %v427 = vshrl.u32 %v426, 7
      %v428 = vsub.s32 %v425, %v427
      %v429 = vrot.slane %v422, %v428
      %430 = vset.pattern.permute.xlu0 0
      %431 = vperm.xlu0 %430, %v429
      %v432 = vpop.permute.xlu0 %431
      %v433 = vlaneseq
      %v434 = vshrl.u32 %v433, 7
      %v435 = vsub.s32 %v351, %v434
      %v436 = vrot.slane %v432, %v435
      %v438 = vunpack.c.l.s4 1966171168
      %v439 = vunpack.c.0.s8 %v438
      %v440 = vlaneseq
      %v441 = vshrl.u32 %v440, 7
      %v442 = vsub.s32 %v439, %v441
      %v443 = vrot.slane %v436, %v442
      %v445 = vunpack.c.l.s4 1966171168
      %v446 = vunpack.c.0.s8 %v445
      %v447 = vlaneseq
      %v448 = vshrl.u32 %v447, 7
      %v449 = vsub.s32 %v446, %v448
      %v450 = vrot.slane %v443, %v449
      %v452 = vadd.f32 %v374, %v450
      %453 = vst.msk [vmem:[#allocation3] sm:$0x1] %vm372, %v452
      // Predicated region
      $region33: #{dice_loss_tpu.1} parent=27 // pred_check
        %p454 = pneg %p203
      $region34: #{dice_loss_tpu.1} parent=27 // pred_check_branch
        %456 = sbr.rel (%p454) target = $region36
      $region35: #{dice_loss_tpu.1} parent=27 // pred_region
        %v457 = vld [vmem:[#allocation2] sm:$0x1]
        %458 = vst.msk [vmem:[%s202] sm:$0x1] %vm372, %v457
        %v459 = vld [vmem:[#allocation3] sm:$0x1]
        %460 = vst.msk [vmem:[%s202 + $0x1] sm:$0x1] %vm372, %v459
      $region36: #{dice_loss_tpu.1} parent=27 // pred_fallthru
        _
      %p461 = scmp.lt.s32.totalorder %s17, 1
      %s462 = scalar_select %p461, %s17, 1
      %s463 = smul.addr %s462, 2
      %s464 = scalar_lea.vmem %s2, %s463
      // Predicated region
      $region37: #{dice_loss_tpu.1} parent=27 // pred_check
        %p465 = pneg %p99
      $region38: #{dice_loss_tpu.1} parent=27 // pred_check_branch
        %467 = sbr.rel (%p465) target = $region40
      $region39: #{dice_loss_tpu.1} parent=27 // pred_region
        _
      $region40: #{dice_loss_tpu.1} parent=27 // pred_fallthru
        _
    $region28: #{dice_loss_tpu.1} parent=5 // pred_fallthru
      _
    %p468 = scmp.le.s32.totalorder 2, %s8
    // Predicated region
    $region41: #{dice_loss_tpu.1} parent=5 // pred_check
      %p469 = pneg %p468
    $region42: #{dice_loss_tpu.1} parent=5 // pred_check_branch
      %471 = sbr.rel (%p469) target = $region44
    $region43: #{dice_loss_tpu.1} parent=5 // pred_region
      %s472 = ssub.s32 %s8, 2
      // Predicated region
      $region45: #{dice_loss_tpu.1} parent=43 // pred_check
        %p473 = pneg %p105
      $region46: #{dice_loss_tpu.1} parent=43 // pred_check_branch
        %475 = sbr.rel (%p473) target = $region48
      $region47: #{dice_loss_tpu.1} parent=43 // pred_region
        %p476 = scmp.lt.s32.totalorder %s19, 1
        %s477 = scalar_select %p476, %s19, 1
        %s478 = smul.addr %s477, 2
        %s479 = scalar_lea.vmem %s2, %s478
      $region48: #{dice_loss_tpu.1} parent=43 // pred_fallthru
        _
    $region44: #{dice_loss_tpu.1} parent=5 // pred_fallthru
      _
  $region6: #{dice_loss_tpu.1} parent=0 // loop_footer
    %s12 = sadd.s32 1, %s8
  $region7: #{dice_loss_tpu.1} parent=0 // loop_footer_branch
    %7 = sbr.rel target = $region3
  $region8: #{dice_loss_tpu.1} parent=0 // loop_exit
    _

</llo_original>
